<compile_context>
chip_gen: v6e
topology: v6e:2x2x1
jax: 0.10.0
libtpu: 0.0.40
codegen_flags: <defaults>
</compile_context>

<pallas_src>
import jax
import jax.numpy as jnp
from jax.experimental import pallas as pl
from jax.experimental.pallas import tpu as pltpu

# ---- "args" of the original module (synthetic config) -----------------------
B = 4                    # batch size
L = 8                    # sequence length
V = 32                   # vocab size (synthetic encoder)
VPAD = 128               # vocab padded to lane width for the one-hot gather matmul
H = 128                  # hidden size (lane-aligned)
TWO_B = 2 * B
N = TWO_B * L            # stacked (src + tgt) token rows = 64
TEMPERATURE = 0.05
INV_TEMPERATURE = 1.0 / TEMPERATURE     # fold the divide into a constant multiply
MATCHING_FUNC = "cos"    # args.matching_func
POOLER = "mean"          # args.pooler
NEG_MASK = 1.0e8         # the `* 100000000` constant in the reference

_VMEM = pl.BlockSpec(memory_space=pltpu.MemorySpace.VMEM)


# -----------------------------------------------------------------------------
# Single fused kernel: encode (src+tgt) + mean-pool + cos matching + CE loss + acc
# -----------------------------------------------------------------------------
def rank_forward_kernel(ids_ref, mask_ref, emb_ref, w_ref, b_ref,
                        sid_col_ref, sid_row_ref, out_ref):
    # ---- embedding gather as a one-hot matmul on the MXU --------------------
    ids = ids_ref[...]                                            # [N, 1] int32
    vcol = jax.lax.broadcasted_iota(jnp.int32, (N, VPAD), 1)
    onehot = (ids == vcol).astype(jnp.float32)                    # [N, VPAD]
    x = jnp.dot(onehot, emb_ref[...],
                preferred_element_type=jnp.float32)               # [N, H], exact gather

    # ---- dense tanh encoder: one 2-D matmul, bf16 MXU operands, f32 acc -----
    h = jnp.dot(x.astype(jnp.bfloat16), w_ref[...],
                preferred_element_type=jnp.float32)               # [N, H]
    h = jnp.tanh(h + b_ref[...])                                  # f32 elementwise (EUP)

    # ---- masked mean pooling as a block-diagonal pooling matmul -------------
    mask = mask_ref[...]                                          # [1, N] f32
    prow = jax.lax.broadcasted_iota(jnp.int32, (TWO_B, N), 0)
    pcol = jax.lax.broadcasted_iota(jnp.int32, (TWO_B, N), 1)
    lo = prow * L
    blockdiag = jnp.logical_and(pcol >= lo, pcol < lo + L)
    pool_w = jnp.where(blockdiag, mask, 0.0)                      # [2B, N]
    pooled = jnp.dot(pool_w, h, preferred_element_type=jnp.float32)   # [2B, H]
    denom = jnp.sum(pool_w, axis=1, keepdims=True)                # [2B, 1]
    # denom is an integer token count; guard the all-padding-row case.  Any
    # per-row scale error from approx=True is cancelled by cos-normalization.
    pooled = pooled * pl.reciprocal(jnp.maximum(denom, 1.0), approx=True)

    # ---- cosine normalization (F.normalize, eps-guarded) ---------------------
    if MATCHING_FUNC == "cos":
        sumsq = jnp.sum(pooled * pooled, axis=-1, keepdims=True)
        pooled = pooled * jax.lax.rsqrt(jnp.maximum(sumsq, 1e-24))

    src = pooled[:B, :]                                           # [B, H]
    tgt = pooled[B:, :]                                           # [B, H]

    # src @ tgt.T without an explicit transpose (contract last dim of both)
    logits = jax.lax.dot_general(
        src, tgt, dimension_numbers=(((1,), (1,)), ((), ())),
        preferred_element_type=jnp.float32)                       # [B, B]
    logits = logits * INV_TEMPERATURE

    row = jax.lax.broadcasted_iota(jnp.int32, (B, B), 0)
    col = jax.lax.broadcasted_iota(jnp.int32, (B, B), 1)
    eye = (row == col).astype(jnp.float32)

    # src_ids mask: ids passed pre-laid-out as [B,1] and [1,B] (no in-kernel relayout)
    same = (sid_col_ref[...] == sid_row_ref[...]).astype(jnp.float32)   # [B, B]
    logits = logits - (same - eye) * NEG_MASK

    # ---- cross-entropy with labels = arange(B), mean reduction ---------------
    diag = jnp.sum(logits * eye, axis=1, keepdims=True)           # [B, 1]
    m = jnp.max(logits, axis=1, keepdims=True)                    # [B, 1]
    lse = m + jnp.log(jnp.sum(jnp.exp(logits - m), axis=1, keepdims=True))
    loss = jnp.sum(lse - diag, axis=0, keepdims=True) * (1.0 / B)  # [1, 1]

    # ---- accuracy: argmax(logits, axis=1) == labels (first max on ties) ------
    is_max = logits == m
    argmax = jnp.min(jnp.where(is_max, col, B), axis=1, keepdims=True)  # [B, 1]
    labels = jax.lax.broadcasted_iota(jnp.int32, (B, 1), 0)
    acc = jnp.sum((argmax == labels).astype(jnp.float32),
                  axis=0, keepdims=True) * (1.0 / B)               # [1, 1]

    # ---- one lane-dense output row: lane 0 = loss, lane 1 = acc --------------
    lane = jax.lax.broadcasted_iota(jnp.int32, (1, H), 1)
    out_ref[...] = jnp.where(lane == 0, loss, jnp.where(lane == 1, acc, 0.0))


# -----------------------------------------------------------------------------
# Wrapper (plain-JAX glue: only free reshapes / concat / pad / dtype casts)
# -----------------------------------------------------------------------------
@jax.jit
def rank_model_forward(params, src_input_ids, src_attention_mask,
                       tgt_input_ids, tgt_attention_mask, src_ids):
    emb_table, w, b = params

    # stack src/tgt so both encodes share one kernel and one MXU stream
    ids = jnp.concatenate([src_input_ids, tgt_input_ids], axis=0)          # [2B, L]
    masks = jnp.concatenate([src_attention_mask, tgt_attention_mask], axis=0)
    ids_flat = ids.reshape(N, 1).astype(jnp.int32)                         # [N, 1]
    mask_flat = masks.reshape(1, N).astype(jnp.float32)                    # [1, N]
    emb_pad = jnp.pad(emb_table.astype(jnp.float32), ((0, VPAD - V), (0, 0)))
    sid_col = src_ids.reshape(B, 1).astype(jnp.int32)
    sid_row = src_ids.reshape(1, B).astype(jnp.int32)

    out = pl.pallas_call(
        rank_forward_kernel,
        out_shape=jax.ShapeDtypeStruct((1, H), jnp.float32),
        in_specs=[_VMEM] * 7,
        out_specs=_VMEM,
    )(ids_flat, mask_flat, emb_pad,
      w.astype(jnp.bfloat16),           # bf16 MXU operand, half the weight DMA
      b.astype(jnp.float32), sid_col, sid_row)

    # training branch of RankModel.forward -> (predict_loss, acc)
    return out[0, 0], out[0, 1]


# -----------------------------------------------------------------------------
if __name__ == "__main__":
    key = jax.random.PRNGKey(0)
    k_emb, k_w, k_b, k_src, k_tgt = jax.random.split(key, 5)

    # deterministic synthetic parameters
    emb_table = 0.1 * jax.random.normal(k_emb, (V, H), dtype=jnp.float32)
    w = 0.1 * jax.random.normal(k_w, (H, H), dtype=jnp.float32)
    b = 0.1 * jax.random.normal(k_b, (1, H), dtype=jnp.float32)
    params = (emb_table, w, b)

    # deterministic inputs
    src_input_ids = jax.random.randint(k_src, (B, L), 0, V, dtype=jnp.int32)
    tgt_input_ids = jax.random.randint(k_tgt, (B, L), 0, V, dtype=jnp.int32)
    lengths = jnp.array([L, L - 2, L - 3, L - 1], dtype=jnp.int32)
    pos = jnp.arange(L, dtype=jnp.int32)[None, :]
    src_attention_mask = (pos < lengths[:, None]).astype(jnp.int32)
    tgt_attention_mask = (pos < lengths[::-1][:, None]).astype(jnp.int32)
    src_ids = jnp.array([0, 1, 1, 2], dtype=jnp.int32)   # duplicate group ids

    loss, acc = rank_model_forward(params, src_input_ids, src_attention_mask,
                                   tgt_input_ids, tgt_attention_mask, src_ids)
    jax.block_until_ready((loss, acc))
    print("KERNEL_OK")
</pallas_src>

<mosaic_0001>
module attributes {stable_mosaic.version = 11 : i64} {
  func.func @rank_forward_kernel(%arg0: memref<64x1xi32, #tpu.memory_space<vmem>>, %arg1: memref<1x64xf32, #tpu.memory_space<vmem>>, %arg2: memref<128x128xf32, #tpu.memory_space<vmem>>, %arg3: memref<128x128xbf16, #tpu.memory_space<vmem>>, %arg4: memref<1x128xf32, #tpu.memory_space<vmem>>, %arg5: memref<4x1xi32, #tpu.memory_space<vmem>>, %arg6: memref<1x4xi32, #tpu.memory_space<vmem>>, %arg7: memref<1x128xf32, #tpu.memory_space<vmem>>) attributes {dimension_semantics = [], scalar_prefetch = 0 : i64, scratch_operands = 0 : i64, tpu.core_type = #tpu.core_type<tc>} {
    %c0 = arith.constant 0 : index
    %c0_0 = arith.constant 0 : index
    %0 = vector.load %arg0[%c0, %c0_0] : memref<64x1xi32, #tpu.memory_space<vmem>>, vector<64x1xi32>
    %1 = tpu.iota {dimensions = array<i32: 1>} : vector<64x128xi32>
    %2 = vector.broadcast %0 : vector<64x1xi32> to vector<64x128xi32>
    %3 = arith.cmpi eq, %2, %1 : vector<64x128xi32>
    %4 = arith.extui %3 : vector<64x128xi1> to vector<64x128xi32>
    %5 = arith.sitofp %4 : vector<64x128xi32> to vector<64x128xf32>
    %c0_1 = arith.constant 0 : index
    %c0_2 = arith.constant 0 : index
    %6 = vector.load %arg2[%c0_1, %c0_2] : memref<128x128xf32, #tpu.memory_space<vmem>>, vector<128x128xf32>
    %cst = arith.constant dense<0.000000e+00> : vector<64x128xf32>
    %7 = tpu.matmul %5, %6, %cst {dimension_numbers = #tpu.dot_dimension_numbers<[1], [0], [0], [1], [0, 0, 1, 1], [], []>} : vector<64x128xf32>, vector<128x128xf32>, vector<64x128xf32> -> vector<64x128xf32>
    %8 = arith.truncf %7 : vector<64x128xf32> to vector<64x128xbf16>
    %c0_3 = arith.constant 0 : index
    %c0_4 = arith.constant 0 : index
    %9 = vector.load %arg3[%c0_3, %c0_4] : memref<128x128xbf16, #tpu.memory_space<vmem>>, vector<128x128xbf16>
    %cst_5 = arith.constant dense<0.000000e+00> : vector<64x128xf32>
    %10 = tpu.matmul %8, %9, %cst_5 {dimension_numbers = #tpu.dot_dimension_numbers<[1], [0], [0], [1], [0, 0, 1, 1], [], []>} : vector<64x128xbf16>, vector<128x128xbf16>, vector<64x128xf32> -> vector<64x128xf32>
    %c0_6 = arith.constant 0 : index
    %c0_7 = arith.constant 0 : index
    %11 = vector.load %arg4[%c0_6, %c0_7] : memref<1x128xf32, #tpu.memory_space<vmem>>, vector<1x128xf32>
    %12 = vector.broadcast %11 : vector<1x128xf32> to vector<64x128xf32>
    %13 = arith.addf %10, %12 : vector<64x128xf32>
    %14 = math.tanh %13 : vector<64x128xf32>
    %c0_8 = arith.constant 0 : index
    %c0_9 = arith.constant 0 : index
    %15 = vector.load %arg1[%c0_8, %c0_9] : memref<1x64xf32, #tpu.memory_space<vmem>>, vector<1x64xf32>
    %16 = tpu.iota {dimensions = array<i32: 0>} : vector<8x64xi32>
    %17 = tpu.iota {dimensions = array<i32: 1>} : vector<8x64xi32>
    %c8_i32 = arith.constant 8 : i32
    %18 = vector.broadcast %c8_i32 : i32 to vector<8x64xi32>
    %19 = arith.muli %16, %18 : vector<8x64xi32>
    %20 = arith.cmpi sge, %17, %19 : vector<8x64xi32>
    %c8_i32_10 = arith.constant 8 : i32
    %21 = vector.broadcast %c8_i32_10 : i32 to vector<8x64xi32>
    %22 = arith.addi %19, %21 : vector<8x64xi32>
    %23 = arith.cmpi slt, %17, %22 : vector<8x64xi32>
    %24 = arith.andi %20, %23 : vector<8x64xi1>
    %cst_11 = arith.constant 0.000000e+00 : f32
    %25 = vector.shape_cast %15 : vector<1x64xf32> to vector<1x64xf32>
    %26 = vector.broadcast %25 : vector<1x64xf32> to vector<8x64xf32>
    %27 = vector.broadcast %cst_11 : f32 to vector<8x64xf32>
    %28 = arith.select %24, %26, %27 : vector<8x64xi1>, vector<8x64xf32>
    %cst_12 = arith.constant dense<0.000000e+00> : vector<8x128xf32>
    %29 = tpu.matmul %28, %14, %cst_12 {dimension_numbers = #tpu.dot_dimension_numbers<[1], [0], [0], [1], [0, 0, 1, 1], [], []>} : vector<8x64xf32>, vector<64x128xf32>, vector<8x128xf32> -> vector<8x128xf32>
    %cst_13 = arith.constant dense<0.000000e+00> : vector<8xf32>
    %30 = vector.multi_reduction <add>, %28, %cst_13 [1] : vector<8x64xf32> to vector<8xf32>
    %31 = vector.shape_cast %30 : vector<8xf32> to vector<8x1xf32>
    %cst_14 = arith.constant 1.000000e+00 : f32
    %32 = vector.broadcast %cst_14 : f32 to vector<8x1xf32>
    %33 = arith.maximumf %31, %32 : vector<8x1xf32>
    %34 = tpu.reciprocal %33 {approx = true} : vector<8x1xf32> -> vector<8x1xf32>
    %35 = vector.broadcast %34 : vector<8x1xf32> to vector<8x128xf32>
    %36 = arith.mulf %29, %35 : vector<8x128xf32>
    %37 = arith.mulf %36, %36 : vector<8x128xf32>
    %cst_15 = arith.constant dense<0.000000e+00> : vector<8xf32>
    %38 = vector.multi_reduction <add>, %37, %cst_15 [1] : vector<8x128xf32> to vector<8xf32>
    %39 = vector.shape_cast %38 : vector<8xf32> to vector<8x1xf32>
    %cst_16 = arith.constant 1.000000e-24 : f32
    %40 = vector.broadcast %cst_16 : f32 to vector<8x1xf32>
    %41 = arith.maximumf %39, %40 : vector<8x1xf32>
    %42 = math.rsqrt %41 : vector<8x1xf32>
    %43 = vector.broadcast %42 : vector<8x1xf32> to vector<8x128xf32>
    %44 = arith.mulf %36, %43 : vector<8x128xf32>
    %45 = vector.extract_strided_slice %44 {offsets = [0, 0], sizes = [4, 128], strides = [1, 1]} : vector<8x128xf32> to vector<4x128xf32>
    %46 = vector.extract_strided_slice %44 {offsets = [4, 0], sizes = [4, 128], strides = [1, 1]} : vector<8x128xf32> to vector<4x128xf32>
    %cst_17 = arith.constant dense<0.000000e+00> : vector<4x4xf32>
    %47 = tpu.matmul %45, %46, %cst_17 {dimension_numbers = #tpu.dot_dimension_numbers<[1], [1], [0], [0], [0, 0, 1, 0], [], []>} : vector<4x128xf32>, vector<4x128xf32>, vector<4x4xf32> -> vector<4x4xf32>
    %cst_18 = arith.constant 2.000000e+01 : f32
    %48 = vector.broadcast %cst_18 : f32 to vector<4x4xf32>
    %49 = arith.mulf %47, %48 : vector<4x4xf32>
    %50 = tpu.iota {dimensions = array<i32: 0>} : vector<4x4xi32>
    %51 = tpu.iota {dimensions = array<i32: 1>} : vector<4x4xi32>
    %52 = arith.cmpi eq, %50, %51 : vector<4x4xi32>
    %53 = arith.extui %52 : vector<4x4xi1> to vector<4x4xi32>
    %54 = arith.sitofp %53 : vector<4x4xi32> to vector<4x4xf32>
    %c0_19 = arith.constant 0 : index
    %c0_20 = arith.constant 0 : index
    %55 = vector.load %arg5[%c0_19, %c0_20] : memref<4x1xi32, #tpu.memory_space<vmem>>, vector<4x1xi32>
    %c0_21 = arith.constant 0 : index
    %c0_22 = arith.constant 0 : index
    %56 = vector.load %arg6[%c0_21, %c0_22] : memref<1x4xi32, #tpu.memory_space<vmem>>, vector<1x4xi32>
    %57 = vector.broadcast %55 : vector<4x1xi32> to vector<4x4xi32>
    %58 = vector.broadcast %56 : vector<1x4xi32> to vector<4x4xi32>
    %59 = arith.cmpi eq, %57, %58 : vector<4x4xi32>
    %60 = arith.extui %59 : vector<4x4xi1> to vector<4x4xi32>
    %61 = arith.sitofp %60 : vector<4x4xi32> to vector<4x4xf32>
    %62 = arith.subf %61, %54 : vector<4x4xf32>
    %cst_23 = arith.constant 1.000000e+08 : f32
    %63 = vector.broadcast %cst_23 : f32 to vector<4x4xf32>
    %64 = arith.mulf %62, %63 : vector<4x4xf32>
    %65 = arith.subf %49, %64 : vector<4x4xf32>
    %66 = arith.mulf %65, %54 : vector<4x4xf32>
    %cst_24 = arith.constant dense<0.000000e+00> : vector<4xf32>
    %67 = vector.multi_reduction <add>, %66, %cst_24 [1] : vector<4x4xf32> to vector<4xf32>
    %68 = vector.shape_cast %67 : vector<4xf32> to vector<4x1xf32>
    %cst_25 = arith.constant dense<0xFF800000> : vector<4xf32>
    %69 = vector.multi_reduction <maximumf>, %65, %cst_25 [1] : vector<4x4xf32> to vector<4xf32>
    %70 = vector.shape_cast %69 : vector<4xf32> to vector<4x1xf32>
    %71 = vector.broadcast %70 : vector<4x1xf32> to vector<4x4xf32>
    %72 = arith.subf %65, %71 : vector<4x4xf32>
    %73 = math.exp %72 : vector<4x4xf32>
    %cst_26 = arith.constant dense<0.000000e+00> : vector<4xf32>
    %74 = vector.multi_reduction <add>, %73, %cst_26 [1] : vector<4x4xf32> to vector<4xf32>
    %75 = vector.shape_cast %74 : vector<4xf32> to vector<4x1xf32>
    %76 = math.log %75 : vector<4x1xf32>
    %77 = arith.addf %70, %76 : vector<4x1xf32>
    %78 = arith.subf %77, %68 : vector<4x1xf32>
    %cst_27 = arith.constant dense<0.000000e+00> : vector<1xf32>
    %79 = vector.multi_reduction <add>, %78, %cst_27 [0] : vector<4x1xf32> to vector<1xf32>
    %80 = vector.shape_cast %79 : vector<1xf32> to vector<1x1xf32>
    %cst_28 = arith.constant 2.500000e-01 : f32
    %81 = vector.broadcast %cst_28 : f32 to vector<1x1xf32>
    %82 = arith.mulf %80, %81 : vector<1x1xf32>
    %83 = vector.broadcast %70 : vector<4x1xf32> to vector<4x4xf32>
    %84 = arith.cmpf oeq, %65, %83 : vector<4x4xf32>
    %c4_i32 = arith.constant 4 : i32
    %85 = vector.broadcast %c4_i32 : i32 to vector<4x4xi32>
    %86 = arith.select %84, %51, %85 : vector<4x4xi1>, vector<4x4xi32>
    %cst_29 = arith.constant dense<2147483647> : vector<4xi32>
    %87 = vector.multi_reduction <minsi>, %86, %cst_29 [1] : vector<4x4xi32> to vector<4xi32>
    %88 = vector.shape_cast %87 : vector<4xi32> to vector<4x1xi32>
    %89 = tpu.iota {dimensions = array<i32: 0>} : vector<4x1xi32>
    %90 = arith.cmpi eq, %88, %89 : vector<4x1xi32>
    %91 = arith.extui %90 : vector<4x1xi1> to vector<4x1xi32>
    %92 = arith.sitofp %91 : vector<4x1xi32> to vector<4x1xf32>
    %cst_30 = arith.constant dense<0.000000e+00> : vector<1xf32>
    %93 = vector.multi_reduction <add>, %92, %cst_30 [0] : vector<4x1xf32> to vector<1xf32>
    %94 = vector.shape_cast %93 : vector<1xf32> to vector<1x1xf32>
    %cst_31 = arith.constant 2.500000e-01 : f32
    %95 = vector.broadcast %cst_31 : f32 to vector<1x1xf32>
    %96 = arith.mulf %94, %95 : vector<1x1xf32>
    %97 = tpu.iota {dimensions = array<i32: 1>} : vector<1x128xi32>
    %c0_i32 = arith.constant 0 : i32
    %98 = vector.broadcast %c0_i32 : i32 to vector<1x128xi32>
    %99 = arith.cmpi eq, %97, %98 : vector<1x128xi32>
    %c1_i32 = arith.constant 1 : i32
    %100 = vector.broadcast %c1_i32 : i32 to vector<1x128xi32>
    %101 = arith.cmpi eq, %97, %100 : vector<1x128xi32>
    %cst_32 = arith.constant 0.000000e+00 : f32
    %102 = vector.shape_cast %96 : vector<1x1xf32> to vector<1x1xf32>
    %103 = vector.broadcast %102 : vector<1x1xf32> to vector<1x128xf32>
    %104 = vector.broadcast %cst_32 : f32 to vector<1x128xf32>
    %105 = arith.select %101, %103, %104 : vector<1x128xi1>, vector<1x128xf32>
    %106 = vector.shape_cast %82 : vector<1x1xf32> to vector<1x1xf32>
    %107 = vector.broadcast %106 : vector<1x1xf32> to vector<1x128xf32>
    %108 = arith.select %99, %107, %105 : vector<1x128xi1>, vector<1x128xf32>
    %c0_33 = arith.constant 0 : index
    %c0_34 = arith.constant 0 : index
    %109 = vector.load %arg7[%c0_33, %c0_34] : memref<1x128xf32, #tpu.memory_space<vmem>>, vector<1x128xf32>
    tpu.vector_store %arg7[%c0_33, %c0_34], %108 {strides = array<i32>} : memref<1x128xf32, #tpu.memory_space<vmem>>, vector<1x128xf32>,
    return
  }
}

</mosaic_0001>

<llo_original>
// kernel: rank_model_forward.1
$region0: #{rank_model_forward.1}
  #allocation0 [shape = 'u32[]', space=smem, size = 0x4, offset = 0x4, fixed_abs, tag = 'smem constant byte address 0x4 - core index']
  #allocation1 [shape = 'u32[144,128]{1,0:T(1,128)}', space=vmem, size = 0x12000, scoped, tag = 'internal scratch']
  %s0 = inlined_call_operand.vmem [shape: s32[64,1], index: 0, kind: input, shape index: {}]
  %s1 = inlined_call_operand.vmem [shape: f32[1,64], index: 1, kind: input, shape index: {}]
  %s2 = inlined_call_operand.vmem [shape: f32[128,128], index: 2, kind: input, shape index: {}]
  %s3 = inlined_call_operand.vmem [shape: bf16[128,128], index: 3, kind: input, shape index: {}]
  %s4 = inlined_call_operand.vmem [shape: f32[1,128], index: 4, kind: input, shape index: {}]
  %s5 = inlined_call_operand.vmem [shape: s32[4,1], index: 5, kind: input, shape index: {}]
  %s6 = inlined_call_operand.vmem [shape: s32[1,4], index: 6, kind: input, shape index: {}]
  %s7 = inlined_call_operand.vmem [shape: f32[1,128], index: 7, kind: output, shape index: {}]
  %s8 = sld [smem:[#allocation0]]
  $region38: #{rank_model_forward.1} parent=0
    _
  %s10 = ssub.s32 1, %s8
  %s11 = scalar_select 0, %s10, %s8
  // Predicated region
  $region2: #{rank_model_forward.1} parent=0 // pred_check
    _
  $region3: #{rank_model_forward.1} parent=0 // pred_check_branch
    %13 = sbr.rel (0) target = $region5
  $region4: #{rank_model_forward.1} parent=0 // pred_region
    _
  $region5: #{rank_model_forward.1} parent=0 // pred_fallthru
    _
  // Predicated region
  $region6: #{rank_model_forward.1} parent=0 // pred_check
    _
  $region7: #{rank_model_forward.1} parent=0 // pred_check_branch
    %15 = sbr.rel (0) target = $region9
  $region8: #{rank_model_forward.1} parent=0 // pred_region
    _
  $region9: #{rank_model_forward.1} parent=0 // pred_fallthru
    _
  // Predicated region
  $region10: #{rank_model_forward.1} parent=0 // pred_check
    _
  $region11: #{rank_model_forward.1} parent=0 // pred_check_branch
    %17 = sbr.rel (0) target = $region13
  $region12: #{rank_model_forward.1} parent=0 // pred_region
    _
  $region13: #{rank_model_forward.1} parent=0 // pred_fallthru
    _
  // Predicated region
  $region14: #{rank_model_forward.1} parent=0 // pred_check
    _
  $region15: #{rank_model_forward.1} parent=0 // pred_check_branch
    %19 = sbr.rel (0) target = $region17
  $region16: #{rank_model_forward.1} parent=0 // pred_region
    _
  $region17: #{rank_model_forward.1} parent=0 // pred_fallthru
    _
  // Predicated region
  $region18: #{rank_model_forward.1} parent=0 // pred_check
    _
  $region19: #{rank_model_forward.1} parent=0 // pred_check_branch
    %21 = sbr.rel (0) target = $region21
  $region20: #{rank_model_forward.1} parent=0 // pred_region
    _
  $region21: #{rank_model_forward.1} parent=0 // pred_fallthru
    _
  // Predicated region
  $region22: #{rank_model_forward.1} parent=0 // pred_check
    _
  $region23: #{rank_model_forward.1} parent=0 // pred_check_branch
    %23 = sbr.rel (0) target = $region25
  $region24: #{rank_model_forward.1} parent=0 // pred_region
    _
  $region25: #{rank_model_forward.1} parent=0 // pred_fallthru
    _
  // Predicated region
  $region26: #{rank_model_forward.1} parent=0 // pred_check
    _
  $region27: #{rank_model_forward.1} parent=0 // pred_check_branch
    %25 = sbr.rel (0) target = $region29
  $region28: #{rank_model_forward.1} parent=0 // pred_region
    _
  $region29: #{rank_model_forward.1} parent=0 // pred_fallthru
    _
  %v27 = vld [vmem:[%s0] sm:$0xff]
  %v28 = vld [vmem:[%s0 + $0x8] sm:$0xff]
  %v29 = vld [vmem:[%s0 + $0x10] sm:$0xff]
  %v30 = vld [vmem:[%s0 + $0x18] sm:$0xff]
  %v31 = vld [vmem:[%s0 + $0x20] sm:$0xff]
  %v32 = vld [vmem:[%s0 + $0x28] sm:$0xff]
  %v33 = vld [vmem:[%s0 + $0x30] sm:$0xff]
  %v34 = vld [vmem:[%s0 + $0x38] sm:$0xff]
  %v35 = vlaneseq
  %v36 = vand.u32 %v35, 127
  %37 = vset.pattern.permute.xlu0 0
  %38 = vperm.xlu0 %37, %v27
  %v39 = vpop.permute.xlu0 %38
  %40 = vset.pattern.permute.xlu0 0
  %41 = vperm.xlu0 %40, %v28
  %v42 = vpop.permute.xlu0 %41
  %43 = vset.pattern.permute.xlu0 0
  %44 = vperm.xlu0 %43, %v29
  %v45 = vpop.permute.xlu0 %44
  %46 = vset.pattern.permute.xlu0 0
  %47 = vperm.xlu0 %46, %v30
  %v48 = vpop.permute.xlu0 %47
  %49 = vset.pattern.permute.xlu0 0
  %50 = vperm.xlu0 %49, %v31
  %v51 = vpop.permute.xlu0 %50
  %52 = vset.pattern.permute.xlu0 0
  %53 = vperm.xlu0 %52, %v32
  %v54 = vpop.permute.xlu0 %53
  %55 = vset.pattern.permute.xlu0 0
  %56 = vperm.xlu0 %55, %v33
  %v57 = vpop.permute.xlu0 %56
  %58 = vset.pattern.permute.xlu0 0
  %59 = vperm.xlu0 %58, %v34
  %v60 = vpop.permute.xlu0 %59
  %vm61 = vcmp.eq.s32.totalorder %v39, %v36
  %vm62 = vcmp.eq.s32.totalorder %v42, %v36
  %vm63 = vcmp.eq.s32.totalorder %v45, %v36
  %vm64 = vcmp.eq.s32.totalorder %v48, %v36
  %vm65 = vcmp.eq.s32.totalorder %v51, %v36
  %vm66 = vcmp.eq.s32.totalorder %v54, %v36
  %vm67 = vcmp.eq.s32.totalorder %v57, %v36
  %vm68 = vcmp.eq.s32.totalorder %v60, %v36
  %v69 = vsel %vm61, 1, 0
  %v70 = vsel %vm62, 1, 0
  %v71 = vsel %vm63, 1, 0
  %v72 = vsel %vm64, 1, 0
  %v73 = vsel %vm65, 1, 0
  %v74 = vsel %vm66, 1, 0
  %v75 = vsel %vm67, 1, 0
  %v76 = vsel %vm68, 1, 0
  %v77 = vcvt.s32.f32 %v69
  %v78 = vcvt.s32.f32 %v70
  %v79 = vcvt.s32.f32 %v71
  %v80 = vcvt.s32.f32 %v72
  %v81 = vcvt.s32.f32 %v73
  %v82 = vcvt.s32.f32 %v74
  %v83 = vcvt.s32.f32 %v75
  %v84 = vcvt.s32.f32 %v76
  %v85 = vld [vmem:[%s2] sm:$0xff]
  %v86 = vld [vmem:[%s2 + $0x8] sm:$0xff]
  %v87 = vld [vmem:[%s2 + $0x10] sm:$0xff]
  %v88 = vld [vmem:[%s2 + $0x18] sm:$0xff]
  %v89 = vld [vmem:[%s2 + $0x20] sm:$0xff]
  %v90 = vld [vmem:[%s2 + $0x28] sm:$0xff]
  %v91 = vld [vmem:[%s2 + $0x30] sm:$0xff]
  %v92 = vld [vmem:[%s2 + $0x38] sm:$0xff]
  %v93 = vld [vmem:[%s2 + $0x40] sm:$0xff]
  %v94 = vld [vmem:[%s2 + $0x48] sm:$0xff]
  %v95 = vld [vmem:[%s2 + $0x50] sm:$0xff]
  %v96 = vld [vmem:[%s2 + $0x58] sm:$0xff]
  %v97 = vld [vmem:[%s2 + $0x60] sm:$0xff]
  %v98 = vld [vmem:[%s2 + $0x68] sm:$0xff]
  %v99 = vld [vmem:[%s2 + $0x70] sm:$0xff]
  %v100 = vld [vmem:[%s2 + $0x78] sm:$0xff]
  %101 = vmatprep.subr.mxu0 0.0
  %102 = vmatpush1.msra.mxu0 %v100
  %103 = vmatprep.subr.mxu0 0.0
  %104 = vmatpush1.msra.mxu0 %v99
  %105 = vmatprep.subr.mxu0 0.0
  %106 = vmatpush1.msra.mxu0 %v98
  %107 = vmatprep.subr.mxu0 0.0
  %108 = vmatpush1.msra.mxu0 %v97
  %109 = vmatprep.subr.mxu0 0.0
  %110 = vmatpush1.msra.mxu0 %v96
  %111 = vmatprep.subr.mxu0 0.0
  %112 = vmatpush1.msra.mxu0 %v95
  %113 = vmatprep.subr.mxu0 0.0
  %114 = vmatpush1.msra.mxu0 %v94
  %115 = vmatprep.subr.mxu0 0.0
  %116 = vmatpush1.msra.mxu0 %v93
  %117 = vmatprep.subr.mxu0 0.0
  %118 = vmatpush1.msra.mxu0 %v92
  %119 = vmatprep.subr.mxu0 0.0
  %120 = vmatpush1.msra.mxu0 %v91
  %121 = vmatprep.subr.mxu0 0.0
  %122 = vmatpush1.msra.mxu0 %v90
  %123 = vmatprep.subr.mxu0 0.0
  %124 = vmatpush1.msra.mxu0 %v89
  %125 = vmatprep.subr.mxu0 0.0
  %126 = vmatpush1.msra.mxu0 %v88
  %127 = vmatprep.subr.mxu0 0.0
  %128 = vmatpush1.msra.mxu0 %v87
  %129 = vmatprep.subr.mxu0 0.0
  %130 = vmatpush1.msra.mxu0 %v86
  %131 = vmatprep.subr.mxu0 0.0
  %132 = vmatpush1.msra.mxu0 %v85
  %133 = vmatprep.subr.mxu0 0.0
  %134 = vmatpush2.msra.mxu0 0.0
  %135 = vmatprep.subr.mxu0 0.0
  %136 = vmatpush2.msra.mxu0 0.0
  %137 = vmatprep.subr.mxu0 0.0
  %138 = vmatpush2.msra.mxu0 0.0
  %139 = vmatprep.subr.mxu0 0.0
  %140 = vmatpush2.msra.mxu0 0.0
  %141 = vmatprep.subr.mxu0 0.0
  %142 = vmatpush2.msra.mxu0 0.0
  %143 = vmatprep.subr.mxu0 0.0
  %144 = vmatpush2.msra.mxu0 0.0
  %145 = vmatprep.subr.mxu0 0.0
  %146 = vmatpush2.msra.mxu0 0.0
  %147 = vmatprep.subr.mxu0 0.0
  %148 = vmatpush2.msra.mxu0 0.0
  %149 = vmatprep.subr.mxu0 0.0
  %150 = vmatpush2.msra.mxu0 0.0
  %151 = vmatprep.subr.mxu0 0.0
  %152 = vmatpush2.msra.mxu0 0.0
  %153 = vmatprep.subr.mxu0 0.0
  %154 = vmatpush2.msra.mxu0 0.0
  %155 = vmatprep.subr.mxu0 0.0
  %156 = vmatpush2.msra.mxu0 0.0
  %157 = vmatprep.subr.mxu0 0.0
  %158 = vmatpush2.msra.mxu0 0.0
  %159 = vmatprep.subr.mxu0 0.0
  %160 = vmatpush2.msra.mxu0 0.0
  %161 = vmatprep.subr.mxu0 0.0
  %162 = vmatpush2.msra.mxu0 0.0
  %163 = vmatprep.subr.mxu0 0.0
  %164 = vmatpush2.msra.mxu0 0.0
  %165 = vmatprep.mubr.f32.mxu0 0.0
  %166 = vmatmul.mubr.f32.gmra.mxu0 %v77
  %v167 = vpop.f32.mrf.mxu0
  %v168 = vadd.f32 0.0, %v167
  %v169 = vpop.f32.mrf.mxu0
  %170 = vmatprep.mubr.f32.mxu0 0.0
  %171 = vmatmul.mubr.f32.gmra.mxu0 %v78
  %v172 = vpop.f32.mrf.mxu0
  %v173 = vadd.f32 0.0, %v172
  %v174 = vpop.f32.mrf.mxu0
  %175 = vmatprep.mubr.f32.mxu0 0.0
  %176 = vmatmul.mubr.f32.gmra.mxu0 %v79
  %v177 = vpop.f32.mrf.mxu0
  %v178 = vadd.f32 0.0, %v177
  %v179 = vpop.f32.mrf.mxu0
  %180 = vmatprep.mubr.f32.mxu0 0.0
  %181 = vmatmul.mubr.f32.gmra.mxu0 %v80
  %v182 = vpop.f32.mrf.mxu0
  %v183 = vadd.f32 0.0, %v182
  %v184 = vpop.f32.mrf.mxu0
  %185 = vmatprep.mubr.f32.mxu0 0.0
  %186 = vmatmul.mubr.f32.gmra.mxu0 %v81
  %v187 = vpop.f32.mrf.mxu0
  %v188 = vadd.f32 0.0, %v187
  %v189 = vpop.f32.mrf.mxu0
  %190 = vmatprep.mubr.f32.mxu0 0.0
  %191 = vmatmul.mubr.f32.gmra.mxu0 %v82
  %v192 = vpop.f32.mrf.mxu0
  %v193 = vadd.f32 0.0, %v192
  %v194 = vpop.f32.mrf.mxu0
  %195 = vmatprep.mubr.f32.mxu0 0.0
  %196 = vmatmul.mubr.f32.gmra.mxu0 %v83
  %v197 = vpop.f32.mrf.mxu0
  %v198 = vadd.f32 0.0, %v197
  %v199 = vpop.f32.mrf.mxu0
  %200 = vmatprep.mubr.f32.mxu0 0.0
  %201 = vmatmul.mubr.f32.gmra.mxu0 %v84
  %v202 = vpop.f32.mrf.mxu0
  %v203 = vadd.f32 0.0, %v202
  %v204 = vpop.f32.mrf.mxu0
  %205 = vdwg.mxu0
  %v206 = vpack.c.bf16 %v173, %v168
  %v207 = vpack.c.bf16 %v183, %v178
  %v208 = vpack.c.bf16 %v193, %v188
  %v209 = vpack.c.bf16 %v203, %v198
  %v210 = vld [vmem:[%s3] sm:$0xf]
  %v211 = vld [vmem:[%s3 + $0x4] sm:$0xf]
  %v212 = vld [vmem:[%s3 + $0x8] sm:$0xf]
  %v213 = vld [vmem:[%s3 + $0xc] sm:$0xf]
  %v214 = vld [vmem:[%s3 + $0x10] sm:$0xf]
  %v215 = vld [vmem:[%s3 + $0x14] sm:$0xf]
  %v216 = vld [vmem:[%s3 + $0x18] sm:$0xf]
  %v217 = vld [vmem:[%s3 + $0x1c] sm:$0xf]
  %v218 = vld [vmem:[%s3 + $0x20] sm:$0xf]
  %v219 = vld [vmem:[%s3 + $0x24] sm:$0xf]
  %v220 = vld [vmem:[%s3 + $0x28] sm:$0xf]
  %v221 = vld [vmem:[%s3 + $0x2c] sm:$0xf]
  %v222 = vld [vmem:[%s3 + $0x30] sm:$0xf]
  %v223 = vld [vmem:[%s3 + $0x34] sm:$0xf]
  %v224 = vld [vmem:[%s3 + $0x38] sm:$0xf]
  %v225 = vld [vmem:[%s3 + $0x3c] sm:$0xf]
  %v226 = vld [vmem:[%s4] sm:$0x1]
  %v228 = vlaneseq
  %v229 = vshrl.u32 %v228, 7
  %v230 = vsub.s32 0, %v229
  %v231 = vrot.slane %v226, %v230
  %v249 = vunpack.c.l.b16 %v210
  %v250 = vunpack.c.l.b16 %v211
  %v251 = vunpack.c.l.b16 %v212
  %v252 = vunpack.c.l.b16 %v213
  %v253 = vunpack.c.l.b16 %v214
  %v254 = vunpack.c.l.b16 %v215
  %v255 = vunpack.c.l.b16 %v216
  %v256 = vunpack.c.l.b16 %v217
  %v257 = vunpack.c.l.b16 %v218
  %v258 = vunpack.c.l.b16 %v219
  %v259 = vunpack.c.l.b16 %v220
  %v260 = vunpack.c.l.b16 %v221
  %v261 = vunpack.c.l.b16 %v222
  %v262 = vunpack.c.l.b16 %v223
  %v263 = vunpack.c.l.b16 %v224
  %v264 = vunpack.c.l.b16 %v225
  %v265 = vpack.c.b16 %v250, %v249
  %v266 = vpack.c.b16 %v252, %v251
  %v267 = vpack.c.b16 %v254, %v253
  %v268 = vpack.c.b16 %v256, %v255
  %v269 = vpack.c.b16 %v258, %v257
  %v270 = vpack.c.b16 %v260, %v259
  %v271 = vpack.c.b16 %v262, %v261
  %v272 = vpack.c.b16 %v264, %v263
  %281 = vmatprep.subr.bf16.mxu0 0
  %282 = vmatpush1.bf16.msra.mxu0 %v272
  %283 = vmatprep.subr.bf16.mxu0 0
  %284 = vmatpush1.bf16.msra.mxu0 %v271
  %285 = vmatprep.subr.bf16.mxu0 0
  %286 = vmatpush1.bf16.msra.mxu0 %v270
  %287 = vmatprep.subr.bf16.mxu0 0
  %288 = vmatpush1.bf16.msra.mxu0 %v269
  %289 = vmatprep.subr.bf16.mxu0 0
  %290 = vmatpush1.bf16.msra.mxu0 %v268
  %291 = vmatprep.subr.bf16.mxu0 0
  %292 = vmatpush1.bf16.msra.mxu0 %v267
  %293 = vmatprep.subr.bf16.mxu0 0
  %294 = vmatpush1.bf16.msra.mxu0 %v266
  %295 = vmatprep.subr.bf16.mxu0 0
  %296 = vmatpush1.bf16.msra.mxu0 %v265
  %297 = vmatprep.subr.bf16.mxu0 0
  %298 = vmatpush2.bf16.msra.mxu0 0
  %299 = vmatprep.subr.bf16.mxu0 0
  %300 = vmatpush2.bf16.msra.mxu0 0
  %301 = vmatprep.subr.bf16.mxu0 0
  %302 = vmatpush2.bf16.msra.mxu0 0
  %303 = vmatprep.subr.bf16.mxu0 0
  %304 = vmatpush2.bf16.msra.mxu0 0
  %305 = vmatprep.subr.bf16.mxu0 0
  %306 = vmatpush2.bf16.msra.mxu0 0
  %307 = vmatprep.subr.bf16.mxu0 0
  %308 = vmatpush2.bf16.msra.mxu0 0
  %309 = vmatprep.subr.bf16.mxu0 0
  %310 = vmatpush2.bf16.msra.mxu0 0
  %311 = vmatprep.subr.bf16.mxu0 0
  %312 = vmatpush2.bf16.msra.mxu0 0
  %313 = vmatprep.mubr.bf16.mxu0 0
  %314 = vmatmul.mubr.bf16.gmra.mxu0 %v206
  %v315 = vpop.f32.mrf.mxu0
  %v316 = vadd.f32 %v231, %v315
  %v317 = vpop.f32.mrf.mxu0
  %v318 = vpop.f32.mrf.mxu0
  %v319 = vadd.f32 %v231, %v318
  %v320 = vpop.f32.mrf.mxu0
  %321 = vmatprep.mubr.bf16.mxu0 0
  %322 = vmatmul.mubr.bf16.gmra.mxu0 %v207
  %v323 = vpop.f32.mrf.mxu0
  %v324 = vadd.f32 %v231, %v323
  %v325 = vpop.f32.mrf.mxu0
  %v326 = vpop.f32.mrf.mxu0
  %v327 = vadd.f32 %v231, %v326
  %v328 = vpop.f32.mrf.mxu0
  %329 = vmatprep.mubr.bf16.mxu0 0
  %330 = vmatmul.mubr.bf16.gmra.mxu0 %v208
  %v331 = vpop.f32.mrf.mxu0
  %v332 = vadd.f32 %v231, %v331
  %v333 = vpop.f32.mrf.mxu0
  %v334 = vpop.f32.mrf.mxu0
  %v335 = vadd.f32 %v231, %v334
  %v336 = vpop.f32.mrf.mxu0
  %337 = vmatprep.mubr.bf16.mxu0 0
  %338 = vmatmul.mubr.bf16.gmra.mxu0 %v209
  %v339 = vpop.f32.mrf.mxu0
  %v340 = vadd.f32 %v231, %v339
  %v341 = vpop.f32.mrf.mxu0
  %v342 = vpop.f32.mrf.mxu0
  %v343 = vadd.f32 %v231, %v342
  %v344 = vpop.f32.mrf.mxu0
  %345 = vdwg.mxu0
  %v346 = vtanh.pop %v316
  %v347 = vtanh.pop %v319
  %v348 = vtanh.pop %v324
  %v349 = vtanh.pop %v327
  %v350 = vtanh.pop %v332
  %v351 = vtanh.pop %v335
  %v352 = vtanh.pop %v340
  %v353 = vtanh.pop %v343
  %v354 = vld [vmem:[%s1] sm:$0x1]
  %v355 = vlaneseq
  %v356 = vshrl.u32 %v355, 7
  %v357 = vmul.u32 %v356, 8
  %vm358 = vcmp.ge.s32.totalorder %v36, %v357
  %v359 = vadd.s32 %v357, 8
  %vm360 = vcmp.lt.s32.totalorder %v36, %v359
  %vm361 = vmand %vm358, %vm360
  %v363 = vlaneseq
  %v364 = vshrl.u32 %v363, 7
  %v365 = vsub.s32 0, %v364
  %v366 = vrot.slane %v354, %v365
  %v368 = vsel %vm361, %v366, 0.0
  %vm369 = vcmask 523264
  %v371 = vsel %vm369, %v368, 0
  %373 = vmatprep.subr.mxu0 0.0
  %374 = vmatpush1.msra.mxu0 0.0
  %375 = vmatprep.subr.mxu0 0.0
  %376 = vmatpush1.msra.mxu0 0.0
  %377 = vmatprep.subr.mxu0 0.0
  %378 = vmatpush1.msra.mxu0 0.0
  %379 = vmatprep.subr.mxu0 0.0
  %380 = vmatpush1.msra.mxu0 0.0
  %381 = vmatprep.subr.mxu0 0.0
  %382 = vmatpush1.msra.mxu0 0.0
  %383 = vmatprep.subr.mxu0 0.0
  %384 = vmatpush1.msra.mxu0 0.0
  %385 = vmatprep.subr.mxu0 0.0
  %386 = vmatpush1.msra.mxu0 0.0
  %387 = vmatprep.subr.mxu0 0.0
  %388 = vmatpush1.msra.mxu0 0.0
  %389 = vmatprep.subr.mxu0 0.0
  %390 = vmatpush1.msra.mxu0 %v353
  %391 = vmatprep.subr.mxu0 0.0
  %392 = vmatpush1.msra.mxu0 %v352
  %393 = vmatprep.subr.mxu0 0.0
  %394 = vmatpush1.msra.mxu0 %v351
  %395 = vmatprep.subr.mxu0 0.0
  %396 = vmatpush1.msra.mxu0 %v350
  %397 = vmatprep.subr.mxu0 0.0
  %398 = vmatpush1.msra.mxu0 %v349
  %399 = vmatprep.subr.mxu0 0.0
  %400 = vmatpush1.msra.mxu0 %v348
  %401 = vmatprep.subr.mxu0 0.0
  %402 = vmatpush1.msra.mxu0 %v347
  %403 = vmatprep.subr.mxu0 0.0
  %404 = vmatpush1.msra.mxu0 %v346
  %405 = vmatprep.subr.mxu0 0.0
  %406 = vmatpush2.msra.mxu0 0.0
  %407 = vmatprep.subr.mxu0 0.0
  %408 = vmatpush2.msra.mxu0 0.0
  %409 = vmatprep.subr.mxu0 0.0
  %410 = vmatpush2.msra.mxu0 0.0
  %411 = vmatprep.subr.mxu0 0.0
  %412 = vmatpush2.msra.mxu0 0.0
  %413 = vmatprep.subr.mxu0 0.0
  %414 = vmatpush2.msra.mxu0 0.0
  %415 = vmatprep.subr.mxu0 0.0
  %416 = vmatpush2.msra.mxu0 0.0
  %417 = vmatprep.subr.mxu0 0.0
  %418 = vmatpush2.msra.mxu0 0.0
  %419 = vmatprep.subr.mxu0 0.0
  %420 = vmatpush2.msra.mxu0 0.0
  %421 = vmatprep.subr.mxu0 0.0
  %422 = vmatpush2.msra.mxu0 0.0
  %423 = vmatprep.subr.mxu0 0.0
  %424 = vmatpush2.msra.mxu0 0.0
  %425 = vmatprep.subr.mxu0 0.0
  %426 = vmatpush2.msra.mxu0 0.0
  %427 = vmatprep.subr.mxu0 0.0
  %428 = vmatpush2.msra.mxu0 0.0
  %429 = vmatprep.subr.mxu0 0.0
  %430 = vmatpush2.msra.mxu0 0.0
  %431 = vmatprep.subr.mxu0 0.0
  %432 = vmatpush2.msra.mxu0 0.0
  %433 = vmatprep.subr.mxu0 0.0
  %434 = vmatpush2.msra.mxu0 0.0
  %435 = vmatprep.subr.mxu0 0.0
  %436 = vmatpush2.msra.mxu0 0.0
  %437 = vmatprep.mubr.f32.mxu0 0.0
  %438 = vmatmul.mubr.f32.gmra.mxu0 %v371
  %v439 = vpop.f32.mrf.mxu0
  %v440 = vadd.f32 0.0, %v439
  %v441 = vpop.f32.mrf.mxu0
  %442 = vdwg.mxu0
  %v443 = vsel %vm369, %v368, 0.0
  %444 = vadd.xlane.f32.xlu0 %v443
  %v445 = vpop.xlane.xlu0 %444
  %v446 = vmax.f32 %v445, 1.0
  %v447 = vrcp.pop %v446
  %v448 = vmul.f32 %v440, %v447
  %v449 = vmul.f32 %v448, %v448
  %450 = vadd.xlane.f32.xlu0 %v449
  %v451 = vpop.xlane.xlu0 %450
  %v452 = vmax.f32 %v451, 1e-24
  %v453 = vrsqrt.pop %v452
  %v454 = vmul.f32 %v448, %v453
  %v456 = vrot.slane %v454, 4
  %458 = vmatprep.subr.mxu0 0.0
  %459 = vmatpush1.xpose.msra.mxu0 0.0
  %460 = vmatprep.subr.mxu0 0.0
  %461 = vmatpush1.xpose.msra.mxu0 0.0
  %462 = vmatprep.subr.mxu0 0.0
  %463 = vmatpush1.xpose.msra.mxu0 0.0
  %464 = vmatprep.subr.mxu0 0.0
  %465 = vmatpush1.xpose.msra.mxu0 0.0
  %466 = vmatprep.subr.mxu0 0.0
  %467 = vmatpush1.xpose.msra.mxu0 0.0
  %468 = vmatprep.subr.mxu0 0.0
  %469 = vmatpush1.xpose.msra.mxu0 0.0
  %470 = vmatprep.subr.mxu0 0.0
  %471 = vmatpush1.xpose.msra.mxu0 0.0
  %472 = vmatprep.subr.mxu0 0.0
  %473 = vmatpush1.xpose.msra.mxu0 0.0
  %474 = vmatprep.subr.mxu0 0.0
  %475 = vmatpush1.xpose.msra.mxu0 0.0
  %476 = vmatprep.subr.mxu0 0.0
  %477 = vmatpush1.xpose.msra.mxu0 0.0
  %478 = vmatprep.subr.mxu0 0.0
  %479 = vmatpush1.xpose.msra.mxu0 0.0
  %480 = vmatprep.subr.mxu0 0.0
  %481 = vmatpush1.xpose.msra.mxu0 0.0
  %482 = vmatprep.subr.mxu0 0.0
  %483 = vmatpush1.xpose.msra.mxu0 0.0
  %484 = vmatprep.subr.mxu0 0.0
  %485 = vmatpush1.xpose.msra.mxu0 0.0
  %486 = vmatprep.subr.mxu0 0.0
  %487 = vmatpush1.xpose.msra.mxu0 0.0
  %488 = vmatprep.subr.mxu0 0.0
  %489 = vmatpush1.xpose.msra.mxu0 %v456
  %490 = vmatprep.subr.mxu0 0.0
  %491 = vmatpush2.xpose.msra.mxu0 0.0
  %492 = vmatprep.subr.mxu0 0.0
  %493 = vmatpush2.xpose.msra.mxu0 0.0
  %494 = vmatprep.subr.mxu0 0.0
  %495 = vmatpush2.xpose.msra.mxu0 0.0
  %496 = vmatprep.subr.mxu0 0.0
  %497 = vmatpush2.xpose.msra.mxu0 0.0
  %498 = vmatprep.subr.mxu0 0.0
  %499 = vmatpush2.xpose.msra.mxu0 0.0
  %500 = vmatprep.subr.mxu0 0.0
  %501 = vmatpush2.xpose.msra.mxu0 0.0
  %502 = vmatprep.subr.mxu0 0.0
  %503 = vmatpush2.xpose.msra.mxu0 0.0
  %504 = vmatprep.subr.mxu0 0.0
  %505 = vmatpush2.xpose.msra.mxu0 0.0
  %506 = vmatprep.subr.mxu0 0.0
  %507 = vmatpush2.xpose.msra.mxu0 0.0
  %508 = vmatprep.subr.mxu0 0.0
  %509 = vmatpush2.xpose.msra.mxu0 0.0
  %510 = vmatprep.subr.mxu0 0.0
  %511 = vmatpush2.xpose.msra.mxu0 0.0
  %512 = vmatprep.subr.mxu0 0.0
  %513 = vmatpush2.xpose.msra.mxu0 0.0
  %514 = vmatprep.subr.mxu0 0.0
  %515 = vmatpush2.xpose.msra.mxu0 0.0
  %516 = vmatprep.subr.mxu0 0.0
  %517 = vmatpush2.xpose.msra.mxu0 0.0
  %518 = vmatprep.subr.mxu0 0.0
  %519 = vmatpush2.xpose.msra.mxu0 0.0
  %520 = vmatprep.subr.mxu0 0.0
  %521 = vmatpush2.xpose.msra.mxu0 0.0
  %522 = vmatprep.mubr.f32.mxu0 0.0
  %523 = vmatmul.mubr.f32.gmra.mxu0 %v454
  %v524 = vpop.f32.mrf.mxu0
  %v525 = vadd.f32 0.0, %v524
  %v526 = vpop.f32.mrf.mxu0
  %527 = vdwg.mxu0
  %v528 = vmul.f32 %v525, 20.0
  %vm529 = vcmp.eq.s32.totalorder %v356, %v36
  %v530 = vsel %vm529, 1, 0
  %v531 = vcvt.s32.f32 %v530
  %v532 = vld [vmem:[%s5] sm:$0xf]
  %v533 = vld [vmem:[%s6] sm:$0x1]
  %534 = vset.pattern.permute.xlu0 0
  %535 = vperm.xlu0 %534, %v532
  %v536 = vpop.permute.xlu0 %535
  %v537 = vlaneseq
  %v538 = vshrl.u32 %v537, 7
  %v539 = vsub.s32 0, %v538
  %v540 = vrot.slane %v533, %v539
  %vm541 = vcmp.eq.s32.totalorder %v536, %v540
  %v542 = vsel %vm541, 1, 0
  %v543 = vcvt.s32.f32 %v542
  %v544 = vsub.f32 %v543, %v531
  %v545 = vmul.f32 %v544, 1e+08
  %v546 = vsub.f32 %v528, %v545
  %v547 = vmul.f32 %v546, %v531
  %vm548 = vcmask 27648
  %v549 = vsel %vm548, %v547, 0.0
  %550 = vadd.xlane.f32.xlu0 %v549
  %v551 = vpop.xlane.xlu0 %550
  %v552 = vsel %vm548, %v546, -inf
  %553 = vmax.xlane.f32.xlu0 %v552
  %v554 = vpop.xlane.xlu0 %553
  %v555 = vsub.f32 %v546, %v554
  %v556 = vmul.f32 %v555, 1.442695
  %v557 = vpow.pop %v556
  %v558 = vsel %vm548, %v557, 0.0
  %559 = vadd.xlane.f32.xlu0 %v558
  %v560 = vpop.xlane.xlu0 %559
  %v561 = vlog2.pop %v560
  %v562 = vmul.f32 %v561, 0.6931472
  %v563 = vadd.f32 %v554, %v562
  %v564 = vsub.f32 %v563, %v551
  %vm565 = vcmask 1043456
  %v566 = vsel %vm565, %v564, 0.0
  %v567 = vrot.slane %v566, 4
  %v568 = vadd.f32 %v566, %v567
  %v569 = vrot.slane %v568, 2
  %v570 = vadd.f32 %v568, %v569
  %v571 = vrot.slane %v570, 1
  %v572 = vadd.f32 %v570, %v571
  %v573 = vmul.f32 %v572, 0.25
  %vm574 = vcmp.eq.f32.partialorder %v546, %v554
  %v575 = vsel %vm574, %v36, 4
  %v576 = vsel %vm548, %v575, 2147483647
  %v577 = vand.u32 %v576, 65535
  %v578 = vshra.s32 %v576, 16
  %v579 = vcvt.s32.f32 %v577
  %v580 = vcvt.s32.f32 %v578
  %581 = vmin.xlane.f32.xlu0 %v580
  %v582 = vpop.xlane.xlu0 %581
  %vm583 = vcmp.eq.f32.partialorder %v580, %v582
  %v584 = vsel %vm583, %v579, inf
  %585 = vmin.xlane.f32.xlu0 %v584
  %v586 = vpop.xlane.xlu0 %585
  %v587 = vcvt.f32.s32 %v586
  %v588 = vcvt.f32.s32 %v582
  %v589 = vshll.u32 %v588, 16
  %v590 = vadd.s32 %v589, %v587
  %vm591 = vcmp.eq.s32.totalorder %v590, %v356
  %v592 = vsel %vm591, 1, 0
  %v593 = vcvt.s32.f32 %v592
  %v594 = vsel %vm565, %v593, 0.0
  %v595 = vrot.slane %v594, 4
  %v596 = vadd.f32 %v594, %v595
  %v597 = vrot.slane %v596, 2
  %v598 = vadd.f32 %v596, %v597
  %v599 = vrot.slane %v598, 1
  %v600 = vadd.f32 %v598, %v599
  %v601 = vmul.f32 %v600, 0.25
  %vm602 = vcmp.eq.s32.totalorder %v36, 0
  %vm603 = vcmp.eq.s32.totalorder %v36, 1
  %v604 = vsel %vm603, %v601, 0.0
  %v605 = vsel %vm602, %v573, %v604
  %606 = vst [vmem:[%s7] sm:$0x1] %v605
  // Predicated region
  $region30: #{rank_model_forward.1} parent=0 // pred_check
    _
  $region31: #{rank_model_forward.1} parent=0 // pred_check_branch
    %608 = sbr.rel (0) target = $region33
  $region32: #{rank_model_forward.1} parent=0 // pred_region
    _
  $region33: #{rank_model_forward.1} parent=0 // pred_fallthru
    _
  // Predicated region
  $region34: #{rank_model_forward.1} parent=0 // pred_check
    _
  $region35: #{rank_model_forward.1} parent=0 // pred_check_branch
    %610 = sbr.rel (0) target = $region37
  $region36: #{rank_model_forward.1} parent=0 // pred_region
    _
  $region37: #{rank_model_forward.1} parent=0 // pred_fallthru
    _

</llo_original>
